<compile_context>
chip_gen: v7x
topology: tpu7x:2x2x1
jax: 0.10.0
libtpu: 0.0.40
codegen_flags: <defaults>
</compile_context>

<pallas_src>
import functools
import math

import jax
import jax.numpy as jnp
from jax import lax
from jax.experimental import pallas as pl
from jax.experimental.pallas import tpu as pltpu

EPS = 1e-5
NEG_INF = -1e30  # stand-in for -inf in key_padding_mask (avoids NaN rows)


def _rup(n, m):
    return -(-n // m) * m


def _tpu_defaults():
    """Generation-aware blocking / VMEM defaults."""
    try:
        kind = jax.devices()[0].device_kind.lower()
    except Exception:  # pragma: no cover - conservative fallback
        kind = ""
    if "v7" in kind or "7x" in kind:
        # v7x: 2 TensorCores, 64 MiB VMEM/TC -> smaller blocks, >=2 steps/TC.
        return dict(two_tc=True, min_steps=4, block_rows=512,
                    vmem_budget=40 * 2**20, vmem_cap=48 * 2**20)
    # v5e / v6e: single TC, 128 MiB VMEM -> biggest block that fits, no split.
    return dict(two_tc=False, min_steps=1, block_rows=1024,
                vmem_budget=100 * 2**20, vmem_cap=100 * 2**20)


def _normformer_cross_kernel(x_ref, ct_ref, mcol_ref, w_ref, vec_ref, out_ref,
                             stack_ref, *, num_heads):
    Bblk, S, D = x_ref.shape
    T = ct_ref.shape[1]
    H = num_heads
    dh = D // H
    rows = Bblk * S
    qrows = Bblk * T
    rows_pad = _rup(rows, 16)  # bf16 sublane-pair alignment for the staged slab

    # ---- masked input + LayerNorm on a flattened (Bblk*S, D) slab ----
    x = x_ref[...].reshape(rows, D)
    m = mcol_ref[...].reshape(rows, 1)                       # 1.0 valid / 0.0 pad
    x = x * m                                                # x = x * mask.unsqueeze(-1)
    mean = jnp.mean(x, axis=-1, keepdims=True)
    var = jnp.mean((x - mean) ** 2, axis=-1, keepdims=True)
    gamma = vec_ref[0:1, :]
    beta = vec_ref[1:2, :]
    xn = (x - mean) * lax.rsqrt(var + EPS) * gamma + beta    # (rows, D) f32

    # ---- fused Q/K/V projection: stage [xn ; class_token] -> one matmul ----
    stack_ref[0:rows, :] = xn.astype(jnp.bfloat16)
    stack_ref[rows_pad:rows_pad + qrows, :] = (
        ct_ref[...].reshape(qrows, D).astype(jnp.bfloat16))

    w_qkv = w_ref[:, 0:3 * D]                                # [Wk | Wv | Wq], lane 0
    proj = jnp.dot(stack_ref[...], w_qkv,
                   preferred_element_type=jnp.float32)       # (rows_pad+qrows, 3D)
    k = proj[0:rows, 0:D] + vec_ref[2:3, :]                  # + bk
    v = proj[0:rows, D:2 * D] + vec_ref[3:4, :]              # + bv
    q = (proj[rows_pad:rows_pad + qrows, 2 * D:3 * D]
         + vec_ref[4:5, :]).reshape(Bblk, T, D)              # + bq

    w_o = w_ref[:, 3 * D:4 * D]
    b_o = vec_ref[5:6, :]
    hsel = w_ref[:, 4 * D:4 * D + H]                         # (D, H) bf16, exact 0/1
    hselT = vec_ref[8:8 + H, :].astype(jnp.bfloat16)         # (H, D)

    # key_padding_mask = (mask != 1): additive bias per (b, s) row,
    # broadcast over heads (scores live as (rows, H)).
    bias = jnp.where(m != 1.0, NEG_INF, 0.0)                 # (rows, 1)

    k3 = k.reshape(Bblk, S, D)
    scale = 1.0 / math.sqrt(dh)

    for t in range(T):  # static; class_token has T == 1 in practice
        qt = q[:, t, :]                                      # (Bblk, D)
        # VPU broadcast of qt inside the multiply — no materialized (rows, D) temp.
        e = (k3 * qt[:, None, :]).reshape(rows, D)
        s = jnp.dot(e.astype(jnp.bfloat16), hsel,
                    preferred_element_type=jnp.float32) * scale + bias  # (rows, H)

        # softmax over the key axis, per (batch, head)
        s3 = s.reshape(Bblk, S, H)
        smax = jnp.max(s3, axis=1, keepdims=True)
        p3 = jnp.exp(s3 - smax)
        denom = jnp.sum(p3, axis=1, keepdims=True)
        p3 = p3 * pl.reciprocal(denom, approx=True)          # (Bblk, S, H)

        # context: expand per-head probs back to D columns, weight V, sum over S.
        pfull = jnp.dot(p3.reshape(rows, H).astype(jnp.bfloat16), hselT,
                        preferred_element_type=jnp.float32)  # (rows, D)
        ctx = jnp.sum((pfull * v).reshape(Bblk, S, D), axis=1)  # (Bblk, D)

        out = jnp.dot(ctx.astype(jnp.bfloat16), w_o,
                      preferred_element_type=jnp.float32) + b_o  # (Bblk, D)
        out_ref[:, t * D:(t + 1) * D] = out.astype(out_ref.dtype)


def normformer_cross_block(x, class_token, mask, params, num_heads):
    """Batch-blocked wrapper: each grid step handles bblk batch elements."""
    B, S, D = x.shape
    T = class_token.shape[1]
    assert D % num_heads == 0
    H = num_heads
    dh = D // H

    cfg = _tpu_defaults()
    lane, sub = 128, 8
    Dp = _rup(D, lane)
    vrows = 8 + _rup(H, 8)

    def _block_bytes(bb):
        x_b = bb * _rup(S, sub) * Dp * 4
        ct_b = bb * _rup(T, sub) * Dp * 4
        m_b = bb * _rup(S, sub) * lane * 4
        out_b = _rup(bb, sub) * _rup(T * D, lane) * 4
        io = 2 * (x_b + ct_b + m_b + out_b)                  # double-buffered blocks
        w_b = _rup(D, 16) * _rup(4 * D + H, lane) * 2
        vec_b = vrows * Dp * 4
        stack_b = _rup(_rup(bb * S, 16) + bb * T, 16) * Dp * 2
        interm = 8 * bb * _rup(S, sub) * Dp * 4              # live f32 intermediates
        return io + 2 * (w_b + vec_b) + stack_b + interm

    # bblk heuristic: biggest block that fits; on v7x keep >= min_steps steps.
    bblk = max(1, min(B, cfg["block_rows"] // max(S, 1)))
    if cfg["two_tc"] and B >= 2:
        target = min(cfg["min_steps"], B)
        bblk = min(bblk, max(1, B // target))
    while bblk > 1 and _block_bytes(bblk) > cfg["vmem_budget"]:
        bblk = max(1, bblk // 2)

    n_steps = -(-B // bblk)
    Bp = n_steps * bblk

    if Bp != B:  # zero-pad batch; padded rows are fully masked & sliced off
        pad = Bp - B
        x = jnp.concatenate([x, jnp.zeros((pad, S, D), x.dtype)], axis=0)
        class_token = jnp.concatenate(
            [class_token, jnp.zeros((pad, T, D), class_token.dtype)], axis=0)
        mask = jnp.concatenate([mask, jnp.zeros((pad, S), mask.dtype)], axis=0)

    mcol = mask.reshape(Bp, S, 1).astype(jnp.float32)

    # Host-side head-selection matrices (exact 0/1; exact in bf16).
    d_idx = jnp.arange(D)[:, None]
    h_idx = jnp.arange(H)[None, :]
    hsel = ((d_idx // dh) == h_idx).astype(jnp.float32)      # (D, H)
    hselT = hsel.T                                           # (H, D)

    # Packed parameters: one bf16 weight slab [Wk|Wv|Wq|Wo|hsel],
    # one f32 vector slab [gamma,beta,bk,bv,bq,bo,0,0,hselT,pad].
    w_slab = jnp.concatenate(
        [params["wk"], params["wv"], params["wq"], params["wo"], hsel],
        axis=1).astype(jnp.bfloat16)                         # (D, 4D + H)
    vecs = jnp.concatenate(
        [params["gamma"], params["beta"], params["bk"], params["bv"],
         params["bq"], params["bo"], jnp.zeros((2, D), jnp.float32),
         hselT, jnp.zeros((_rup(H, 8) - H, D), jnp.float32)],
        axis=0)                                              # (vrows, D)

    kernel = functools.partial(_normformer_cross_kernel, num_heads=num_heads)

    in_specs = [
        pl.BlockSpec((bblk, S, D), lambda b: (b, 0, 0)),     # x
        pl.BlockSpec((bblk, T, D), lambda b: (b, 0, 0)),     # class_token
        pl.BlockSpec((bblk, S, 1), lambda b: (b, 0, 0)),     # mask (column form)
        pl.BlockSpec((D, 4 * D + H), lambda b: (0, 0)),      # packed weight slab
        pl.BlockSpec((vrows, D), lambda b: (0, 0)),          # packed vector slab
    ]
    out_spec = pl.BlockSpec((bblk, T * D), lambda b: (b, 0))  # lane-dense 2D output

    stack_rows = _rup(bblk * S, 16) + bblk * T
    scratch_shapes = [pltpu.VMEM((stack_rows, D), jnp.bfloat16)]

    # Advisory cost estimate + byte-accurate VMEM budget.
    rows_tot = Bp * S
    qrows_tot = Bp * T
    flops = (2 * (rows_tot + qrows_tot) * D * 3 * D          # fused Q/K/V projection
             + 2 * qrows_tot * D * D                         # output projection
             + 4 * rows_tot * T * D * H                      # score/context head matmuls
             + 6 * rows_tot * D)                             # elementwise
    transcendentals = rows_tot * T * H + rows_tot
    bytes_accessed = (4 * (x.size + class_token.size + mcol.size + Bp * T * D)
                      + n_steps * (2 * w_slab.size + 4 * vecs.size))
    vmem_limit = int(min(cfg["vmem_cap"],
                         max(16 * 2**20, 2 * _block_bytes(bblk) + 4 * 2**20)))

    out2d = pl.pallas_call(
        kernel,
        out_shape=jax.ShapeDtypeStruct((Bp, T * D), jnp.float32),
        grid_spec=pltpu.PrefetchScalarGridSpec(
            num_scalar_prefetch=0,
            grid=(n_steps,),
            in_specs=in_specs,
            out_specs=out_spec,
            scratch_shapes=scratch_shapes,
        ),
        compiler_params=pltpu.CompilerParams(
            dimension_semantics=("parallel",),
            vmem_limit_bytes=vmem_limit),
        cost_estimate=pl.CostEstimate(
            flops=int(flops),
            transcendentals=int(transcendentals),
            bytes_accessed=int(bytes_accessed)),
    )(x, class_token, mcol, w_slab, vecs)
    return out2d.reshape(Bp, T, D)[:B]


def ref_forward(x, class_token, mask, params, num_heads):
    """Pure-JAX f32 reference mirroring the PyTorch forward semantics."""
    B, S, D = x.shape
    T = class_token.shape[1]
    dh = D // num_heads

    xm = x * mask[..., None]
    mean = xm.mean(-1, keepdims=True)
    var = ((xm - mean) ** 2).mean(-1, keepdims=True)
    xn = (xm - mean) / jnp.sqrt(var + EPS) * params["gamma"][0] + params["beta"][0]

    q = class_token @ params["wq"] + params["bq"][0]
    k = xn @ params["wk"] + params["bk"][0]
    v = xn @ params["wv"] + params["bv"][0]

    qh = q.reshape(B, T, num_heads, dh).transpose(0, 2, 1, 3)
    kh = k.reshape(B, S, num_heads, dh).transpose(0, 2, 1, 3)
    vh = v.reshape(B, S, num_heads, dh).transpose(0, 2, 1, 3)

    sc = jnp.einsum("bhtd,bhsd->bhts", qh, kh) / math.sqrt(dh)
    sc = sc + jnp.where(mask[:, None, None, :] != 1.0, NEG_INF, 0.0)
    p = jax.nn.softmax(sc, axis=-1)
    o = jnp.einsum("bhts,bhsd->bhtd", p, vh).transpose(0, 2, 1, 3).reshape(B, T, D)
    return o @ params["wo"] + params["bo"][0]


if __name__ == "__main__":
    B, S, T = 8, 8, 1
    input_dim, mlp_dim, num_heads = 32, 64, 4  # mlp_dim unused by forward()
    D = input_dim

    key = jax.random.PRNGKey(0)
    keys = jax.random.split(key, 12)

    x = jax.random.normal(keys[0], (B, S, D), jnp.float32)
    class_token = jax.random.normal(keys[1], (B, T, D), jnp.float32)
    lengths = jnp.array([6, 8, 3, 8, 1, 5, 8, 7], dtype=jnp.int32)
    mask = (jnp.arange(S)[None, :] < lengths[:, None]).astype(jnp.float32)  # (B, S)

    def w(k, shape, scale=0.1):
        return scale * jax.random.normal(k, shape, jnp.float32)

    params = {
        "gamma": 1.0 + w(keys[2], (1, D)),
        "beta": w(keys[3], (1, D)),
        "wq": w(keys[4], (D, D)),
        "wk": w(keys[5], (D, D)),
        "wv": w(keys[6], (D, D)),
        "bq": w(keys[7], (1, D)),
        "bk": w(keys[8], (1, D)),
        "bv": w(keys[9], (1, D)),
        "wo": w(keys[10], (D, D)),
        "bo": w(keys[11], (1, D)),
    }

    out = normformer_cross_block(x, class_token, mask, params, num_heads)
    out = jax.block_until_ready(out)

    ref = ref_forward(x, class_token, mask, params, num_heads)
    assert out.shape == (B, T, D), out.shape
    # bf16 MXU operands (f32 accumulation) + approx reciprocal -> looser
    # tolerance than a pure-f32 path.
    err = float(jnp.max(jnp.abs(out - ref)))
    assert jnp.allclose(out, ref, atol=4e-2, rtol=4e-2), err
    print("KERNEL_OK")
</pallas_src>

<mosaic_0001>
module attributes {stable_mosaic.version = 11 : i64} {
  func.func @_normformer_cross_kernel(%arg0: i32, %arg1: memref<8x8x32xf32, #tpu.memory_space<vmem>>, %arg2: memref<8x1x32xf32, #tpu.memory_space<vmem>>, %arg3: memref<8x8x1xf32, #tpu.memory_space<vmem>>, %arg4: memref<32x132xbf16, #tpu.memory_space<vmem>>, %arg5: memref<16x32xf32, #tpu.memory_space<vmem>>, %arg6: memref<8x32xf32, #tpu.memory_space<vmem>>, %arg7: memref<72x32xbf16, #tpu.memory_space<vmem>>) attributes {dimension_semantics = [#tpu.dimension_semantics<parallel>], iteration_bounds = array<i64: 1>, scalar_prefetch = 0 : i64, scratch_operands = 1 : i64, tpu.core_type = #tpu.core_type<tc>, window_params = [{transform_indices = @transform_0, window_bounds = array<i64: 8, 8, 32>}, {transform_indices = @transform_1, window_bounds = array<i64: 8, 1, 32>}, {transform_indices = @transform_2, window_bounds = array<i64: 8, 8, 1>}, {pipeline_mode = #tpu.pipeline_mode<synchronous>, transform_indices = @transform_3, window_bounds = array<i64: 32, 132>}, {pipeline_mode = #tpu.pipeline_mode<synchronous>, transform_indices = @transform_4, window_bounds = array<i64: 16, 32>}, {transform_indices = @transform_5, window_bounds = array<i64: 8, 32>}]} {
    %c0 = arith.constant 0 : index
    %c0_0 = arith.constant 0 : index
    %c0_1 = arith.constant 0 : index
    %0 = vector.load %arg1[%c0, %c0_0, %c0_1] : memref<8x8x32xf32, #tpu.memory_space<vmem>>, vector<8x8x32xf32>
    %1 = vector.shape_cast %0 : vector<8x8x32xf32> to vector<64x32xf32>
    %c0_2 = arith.constant 0 : index
    %c0_3 = arith.constant 0 : index
    %c0_4 = arith.constant 0 : index
    %2 = vector.load %arg3[%c0_2, %c0_3, %c0_4] : memref<8x8x1xf32, #tpu.memory_space<vmem>>, vector<8x8x1xf32>
    %3 = vector.shape_cast %2 : vector<8x8x1xf32> to vector<64x1xf32>
    %4 = vector.broadcast %3 : vector<64x1xf32> to vector<64x32xf32>
    %5 = arith.mulf %1, %4 : vector<64x32xf32>
    %cst = arith.constant dense<0.000000e+00> : vector<64xf32>
    %6 = vector.multi_reduction <add>, %5, %cst [1] : vector<64x32xf32> to vector<64xf32>
    %7 = vector.shape_cast %6 : vector<64xf32> to vector<64x1xf32>
    %cst_5 = arith.constant 3.200000e+01 : f32
    %8 = vector.broadcast %cst_5 : f32 to vector<64x1xf32>
    %9 = arith.divf %7, %8 : vector<64x1xf32>
    %10 = vector.broadcast %9 : vector<64x1xf32> to vector<64x32xf32>
    %11 = arith.subf %5, %10 : vector<64x32xf32>
    %12 = arith.mulf %11, %11 : vector<64x32xf32>
    %cst_6 = arith.constant dense<0.000000e+00> : vector<64xf32>
    %13 = vector.multi_reduction <add>, %12, %cst_6 [1] : vector<64x32xf32> to vector<64xf32>
    %14 = vector.shape_cast %13 : vector<64xf32> to vector<64x1xf32>
    %cst_7 = arith.constant 3.200000e+01 : f32
    %15 = vector.broadcast %cst_7 : f32 to vector<64x1xf32>
    %16 = arith.divf %14, %15 : vector<64x1xf32>
    %c0_8 = arith.constant 0 : index
    %c0_9 = arith.constant 0 : index
    %17 = vector.load %arg5[%c0_8, %c0_9] : memref<16x32xf32, #tpu.memory_space<vmem>>, vector<1x32xf32>
    %c1 = arith.constant 1 : index
    %c0_10 = arith.constant 0 : index
    %18 = vector.load %arg5[%c1, %c0_10] : memref<16x32xf32, #tpu.memory_space<vmem>>, vector<1x32xf32>
    %19 = vector.broadcast %9 : vector<64x1xf32> to vector<64x32xf32>
    %20 = arith.subf %5, %19 : vector<64x32xf32>
    %cst_11 = arith.constant 9.99999974E-6 : f32
    %21 = vector.broadcast %cst_11 : f32 to vector<64x1xf32>
    %22 = arith.addf %16, %21 : vector<64x1xf32>
    %23 = math.rsqrt %22 : vector<64x1xf32>
    %24 = vector.broadcast %23 : vector<64x1xf32> to vector<64x32xf32>
    %25 = arith.mulf %20, %24 : vector<64x32xf32>
    %26 = vector.broadcast %17 : vector<1x32xf32> to vector<64x32xf32>
    %27 = arith.mulf %25, %26 : vector<64x32xf32>
    %28 = vector.broadcast %18 : vector<1x32xf32> to vector<64x32xf32>
    %29 = arith.addf %27, %28 : vector<64x32xf32>
    %30 = arith.truncf %29 : vector<64x32xf32> to vector<64x32xbf16>
    %c0_12 = arith.constant 0 : index
    %c0_13 = arith.constant 0 : index
    %31 = vector.load %arg7[%c0_12, %c0_13] : memref<72x32xbf16, #tpu.memory_space<vmem>>, vector<64x32xbf16>
    tpu.vector_store %arg7[%c0_12, %c0_13], %30 {strides = array<i32>} : memref<72x32xbf16, #tpu.memory_space<vmem>>, vector<64x32xbf16>,
    %c0_14 = arith.constant 0 : index
    %c0_15 = arith.constant 0 : index
    %c0_16 = arith.constant 0 : index
    %32 = vector.load %arg2[%c0_14, %c0_15, %c0_16] : memref<8x1x32xf32, #tpu.memory_space<vmem>>, vector<8x1x32xf32>
    %33 = vector.shape_cast %32 : vector<8x1x32xf32> to vector<8x32xf32>
    %34 = arith.truncf %33 : vector<8x32xf32> to vector<8x32xbf16>
    %c64 = arith.constant 64 : index
    %c0_17 = arith.constant 0 : index
    %35 = vector.load %arg7[%c64, %c0_17] : memref<72x32xbf16, #tpu.memory_space<vmem>>, vector<8x32xbf16>
    tpu.vector_store %arg7[%c64, %c0_17], %34 {strides = array<i32>} : memref<72x32xbf16, #tpu.memory_space<vmem>>, vector<8x32xbf16>,
    %c0_18 = arith.constant 0 : index
    %c0_19 = arith.constant 0 : index
    %36 = vector.load %arg4[%c0_18, %c0_19] : memref<32x132xbf16, #tpu.memory_space<vmem>>, vector<32x96xbf16>
    %c0_20 = arith.constant 0 : index
    %c0_21 = arith.constant 0 : index
    %37 = vector.load %arg7[%c0_20, %c0_21] : memref<72x32xbf16, #tpu.memory_space<vmem>>, vector<72x32xbf16>
    %cst_22 = arith.constant dense<0.000000e+00> : vector<72x96xf32>
    %38 = tpu.matmul %37, %36, %cst_22 {dimension_numbers = #tpu.dot_dimension_numbers<[1], [0], [0], [1], [0, 0, 1, 1], [], []>} : vector<72x32xbf16>, vector<32x96xbf16>, vector<72x96xf32> -> vector<72x96xf32>
    %39 = vector.extract_strided_slice %38 {offsets = [0, 0], sizes = [64, 32], strides = [1, 1]} : vector<72x96xf32> to vector<64x32xf32>
    %c2 = arith.constant 2 : index
    %c0_23 = arith.constant 0 : index
    %40 = vector.load %arg5[%c2, %c0_23] : memref<16x32xf32, #tpu.memory_space<vmem>>, vector<1x32xf32>
    %41 = vector.broadcast %40 : vector<1x32xf32> to vector<64x32xf32>
    %42 = arith.addf %39, %41 : vector<64x32xf32>
    %43 = vector.extract_strided_slice %38 {offsets = [0, 32], sizes = [64, 32], strides = [1, 1]} : vector<72x96xf32> to vector<64x32xf32>
    %c3 = arith.constant 3 : index
    %c0_24 = arith.constant 0 : index
    %44 = vector.load %arg5[%c3, %c0_24] : memref<16x32xf32, #tpu.memory_space<vmem>>, vector<1x32xf32>
    %45 = vector.broadcast %44 : vector<1x32xf32> to vector<64x32xf32>
    %46 = arith.addf %43, %45 : vector<64x32xf32>
    %47 = vector.extract_strided_slice %38 {offsets = [64, 64], sizes = [8, 32], strides = [1, 1]} : vector<72x96xf32> to vector<8x32xf32>
    %c4 = arith.constant 4 : index
    %c0_25 = arith.constant 0 : index
    %48 = vector.load %arg5[%c4, %c0_25] : memref<16x32xf32, #tpu.memory_space<vmem>>, vector<1x32xf32>
    %49 = vector.broadcast %48 : vector<1x32xf32> to vector<8x32xf32>
    %50 = arith.addf %47, %49 : vector<8x32xf32>
    %51 = vector.shape_cast %50 : vector<8x32xf32> to vector<8x1x32xf32>
    %c0_26 = arith.constant 0 : index
    %c96 = arith.constant 96 : index
    %52 = vector.load %arg4[%c0_26, %c96] : memref<32x132xbf16, #tpu.memory_space<vmem>>, vector<32x32xbf16>
    %c5 = arith.constant 5 : index
    %c0_27 = arith.constant 0 : index
    %53 = vector.load %arg5[%c5, %c0_27] : memref<16x32xf32, #tpu.memory_space<vmem>>, vector<1x32xf32>
    %c0_28 = arith.constant 0 : index
    %c128 = arith.constant 128 : index
    %54 = vector.load %arg4[%c0_28, %c128] : memref<32x132xbf16, #tpu.memory_space<vmem>>, vector<32x4xbf16>
    %c8 = arith.constant 8 : index
    %c0_29 = arith.constant 0 : index
    %55 = vector.load %arg5[%c8, %c0_29] : memref<16x32xf32, #tpu.memory_space<vmem>>, vector<4x32xf32>
    %56 = arith.truncf %55 : vector<4x32xf32> to vector<4x32xbf16>
    %cst_30 = arith.constant 1.000000e+00 : f32
    %57 = vector.broadcast %cst_30 : f32 to vector<64x1xf32>
    %58 = arith.cmpf one, %3, %57 : vector<64x1xf32>
    %cst_31 = arith.constant -1.000000e+30 : f32
    %cst_32 = arith.constant 0.000000e+00 : f32
    %59 = vector.broadcast %cst_31 : f32 to vector<64x1xf32>
    %60 = vector.broadcast %cst_32 : f32 to vector<64x1xf32>
    %61 = arith.select %58, %59, %60 : vector<64x1xi1>, vector<64x1xf32>
    %62 = vector.shape_cast %42 : vector<64x32xf32> to vector<8x8x32xf32>
    %63 = vector.shape_cast %51 : vector<8x1x32xf32> to vector<8x32xf32>
    %64 = vector.shape_cast %63 : vector<8x32xf32> to vector<8x1x32xf32>
    %65 = vector.broadcast %64 : vector<8x1x32xf32> to vector<8x8x32xf32>
    %66 = arith.mulf %62, %65 : vector<8x8x32xf32>
    %67 = vector.shape_cast %66 : vector<8x8x32xf32> to vector<64x32xf32>
    %68 = arith.truncf %67 : vector<64x32xf32> to vector<64x32xbf16>
    %cst_33 = arith.constant dense<0.000000e+00> : vector<64x4xf32>
    %69 = tpu.matmul %68, %54, %cst_33 {dimension_numbers = #tpu.dot_dimension_numbers<[1], [0], [0], [1], [0, 0, 1, 1], [], []>} : vector<64x32xbf16>, vector<32x4xbf16>, vector<64x4xf32> -> vector<64x4xf32>
    %cst_34 = arith.constant 0.353553385 : f32
    %70 = vector.broadcast %cst_34 : f32 to vector<64x4xf32>
    %71 = arith.mulf %69, %70 : vector<64x4xf32>
    %72 = vector.broadcast %61 : vector<64x1xf32> to vector<64x4xf32>
    %73 = arith.addf %71, %72 : vector<64x4xf32>
    %74 = vector.shape_cast %73 : vector<64x4xf32> to vector<8x8x4xf32>
    %cst_35 = arith.constant dense<0xFF800000> : vector<8x4xf32>
    %75 = vector.multi_reduction <maximumf>, %74, %cst_35 [1] : vector<8x8x4xf32> to vector<8x4xf32>
    %76 = vector.shape_cast %75 : vector<8x4xf32> to vector<8x1x4xf32>
    %77 = vector.broadcast %76 : vector<8x1x4xf32> to vector<8x8x4xf32>
    %78 = arith.subf %74, %77 : vector<8x8x4xf32>
    %79 = math.exp %78 : vector<8x8x4xf32>
    %cst_36 = arith.constant dense<0.000000e+00> : vector<8x4xf32>
    %80 = vector.multi_reduction <add>, %79, %cst_36 [1] : vector<8x8x4xf32> to vector<8x4xf32>
    %81 = vector.shape_cast %80 : vector<8x4xf32> to vector<8x1x4xf32>
    %82 = tpu.reciprocal %81 {approx = true} : vector<8x1x4xf32> -> vector<8x1x4xf32>
    %83 = vector.broadcast %82 : vector<8x1x4xf32> to vector<8x8x4xf32>
    %84 = arith.mulf %79, %83 : vector<8x8x4xf32>
    %85 = vector.shape_cast %84 : vector<8x8x4xf32> to vector<64x4xf32>
    %86 = arith.truncf %85 : vector<64x4xf32> to vector<64x4xbf16>
    %cst_37 = arith.constant dense<0.000000e+00> : vector<64x32xf32>
    %87 = tpu.matmul %86, %56, %cst_37 {dimension_numbers = #tpu.dot_dimension_numbers<[1], [0], [0], [1], [0, 0, 1, 1], [], []>} : vector<64x4xbf16>, vector<4x32xbf16>, vector<64x32xf32> -> vector<64x32xf32>
    %88 = arith.mulf %87, %46 : vector<64x32xf32>
    %89 = vector.shape_cast %88 : vector<64x32xf32> to vector<8x8x32xf32>
    %cst_38 = arith.constant dense<0.000000e+00> : vector<8x32xf32>
    %90 = vector.multi_reduction <add>, %89, %cst_38 [1] : vector<8x8x32xf32> to vector<8x32xf32>
    %91 = arith.truncf %90 : vector<8x32xf32> to vector<8x32xbf16>
    %cst_39 = arith.constant dense<0.000000e+00> : vector<8x32xf32>
    %92 = tpu.matmul %91, %52, %cst_39 {dimension_numbers = #tpu.dot_dimension_numbers<[1], [0], [0], [1], [0, 0, 1, 1], [], []>} : vector<8x32xbf16>, vector<32x32xbf16>, vector<8x32xf32> -> vector<8x32xf32>
    %93 = vector.broadcast %53 : vector<1x32xf32> to vector<8x32xf32>
    %94 = arith.addf %92, %93 : vector<8x32xf32>
    %c0_40 = arith.constant 0 : index
    %c0_41 = arith.constant 0 : index
    %95 = vector.load %arg6[%c0_40, %c0_41] : memref<8x32xf32, #tpu.memory_space<vmem>>, vector<8x32xf32>
    tpu.vector_store %arg6[%c0_40, %c0_41], %94 {strides = array<i32>} : memref<8x32xf32, #tpu.memory_space<vmem>>, vector<8x32xf32>,
    return
  }
  func.func @transform_0(%arg0: i32) -> (i32, i32, i32) {
    %c0_i32 = arith.constant 0 : i32
    %c0_i32_0 = arith.constant 0 : i32
    %c0_i32_1 = arith.constant 0 : i32
    return %arg0, %c0_i32, %c0_i32_0 : i32, i32, i32
  }
  func.func @transform_1(%arg0: i32) -> (i32, i32, i32) {
    %c0_i32 = arith.constant 0 : i32
    %c0_i32_0 = arith.constant 0 : i32
    %c0_i32_1 = arith.constant 0 : i32
    return %arg0, %c0_i32, %c0_i32_0 : i32, i32, i32
  }
  func.func @transform_2(%arg0: i32) -> (i32, i32, i32) {
    %c0_i32 = arith.constant 0 : i32
    %c0_i32_0 = arith.constant 0 : i32
    %c0_i32_1 = arith.constant 0 : i32
    return %arg0, %c0_i32, %c0_i32_0 : i32, i32, i32
  }
  func.func @transform_3(%arg0: i32) -> (i32, i32) {
    %c0_i32 = arith.constant 0 : i32
    %c0_i32_0 = arith.constant 0 : i32
    %c0_i32_1 = arith.constant 0 : i32
    return %c0_i32, %c0_i32_0 : i32, i32
  }
  func.func @transform_4(%arg0: i32) -> (i32, i32) {
    %c0_i32 = arith.constant 0 : i32
    %c0_i32_0 = arith.constant 0 : i32
    %c0_i32_1 = arith.constant 0 : i32
    return %c0_i32, %c0_i32_0 : i32, i32
  }
  func.func @transform_5(%arg0: i32) -> (i32, i32) {
    %c0_i32 = arith.constant 0 : i32
    %c0_i32_0 = arith.constant 0 : i32
    return %arg0, %c0_i32 : i32, i32
  }
}

</mosaic_0001>

<llo_original>
// kernel: tpu_custom_call.1
$region0: #{tpu_custom_call.1}
  #allocation0 [shape = 'u32[]', space=smem, size = 0x4, offset = 0x4, fixed_abs, tag = 'smem constant byte address 0x4 - core index']
  #allocation1 [shape = 'u32[144,128]{1,0:T(1,128)}', space=vmem, size = 0x12000, scoped, tag = 'internal scratch']
  #allocation2 [shape = 'bf16[72,32]{1,0:T(8,128)(2,1)}', space=vmem, size = 0x4800, scoped, tag = 'scratch operand']
  %s0 = inlined_call_operand.vmem [shape: f32[8,8,32], index: 0, kind: input, shape index: {}]
  %s1 = inlined_call_operand.hbm [shape: f32[8,1,32], index: 1, kind: input, shape index: {}]
  %s2 = inlined_call_operand.vmem [shape: f32[8,8,1], index: 2, kind: input, shape index: {}]
  %s3 = inlined_call_operand.hbm [shape: bf16[32,132], index: 3, kind: input, shape index: {}]
  %s4 = inlined_call_operand.vmem [shape: f32[16,32], index: 4, kind: input, shape index: {}]
  %s5 = inlined_call_operand.hbm [shape: f32[8,32], index: 5, kind: output, shape index: {}]
  %s6 = sld [smem:[#allocation0]]
  $region38: #{tpu_custom_call.1} parent=0
    _
  %s8 = ssub.s32 1, %s6
  %s9 = scalar_select 0, %s8, %s6
  $region1: #{tpu_custom_call.1} parent=0
    #allocation3 [shape = 'u8[4096]{0}', space=vmem, size = 0x1000, scoped, tag = 'input window, operand 1, single buffered']
    #allocation4 [shape = 's32[1]{0}', space=sflag, size = 0x4, scoped, tag = 'scoped memory for tpu_custom_call.1']
    #allocation5 [shape = 's32[1]{0}', space=sflag, size = 0x4, scoped, tag = 'scoped memory for tpu_custom_call.1']
    #allocation6 [shape = 'u8[16384]{0}', space=vmem, size = 0x4000, scoped, tag = 'input window, operand 3, single buffered']
    #allocation7 [shape = 's32[1]{0}', space=sflag, size = 0x4, scoped, tag = 'scoped memory for tpu_custom_call.1']
    #allocation8 [shape = 'u8[4096]{0}', space=vmem, size = 0x1000, scoped, tag = 'output window, operand 0, single buffered']
    %10 = vsyncpa [#allocation4], 0
    %11 = vsyncpa [#allocation7], 0
    %12 = vsyncpa [#allocation5], 0
    // Predicated region
    $region2: #{tpu_custom_call.1} parent=1 // pred_check
      _
    $region3: #{tpu_custom_call.1} parent=1 // pred_check_branch
      %14 = sbr.rel (0) target = $region5
    $region4: #{tpu_custom_call.1} parent=1 // pred_region
      _
    $region5: #{tpu_custom_call.1} parent=1 // pred_fallthru
      _
    // Predicated region
    $region6: #{tpu_custom_call.1} parent=1 // pred_check
      _
    $region7: #{tpu_custom_call.1} parent=1 // pred_check_branch
      %16 = sbr.rel (0) target = $region9
    $region8: #{tpu_custom_call.1} parent=1 // pred_region
      %s18 = ssub.s32 128, 128
      %19 = vsyncadd [#allocation4], %s18
      %s20 = sshll.u32 [#allocation3], 4
      %s21 = int_to_ptr.vmem [resolvable:$true] %s20
      %26 = dma.hbm_to_vmem [thread:$0]  %s1, 128, %s21, [#allocation4], 16, 16, 1
    $region9: #{tpu_custom_call.1} parent=1 // pred_fallthru
      _
    // Predicated region
    $region10: #{tpu_custom_call.1} parent=1 // pred_check
      _
    $region11: #{tpu_custom_call.1} parent=1 // pred_check_branch
      %28 = sbr.rel (0) target = $region13
    $region12: #{tpu_custom_call.1} parent=1 // pred_region
      _
    $region13: #{tpu_custom_call.1} parent=1 // pred_fallthru
      _
    // Predicated region
    $region14: #{tpu_custom_call.1} parent=1 // pred_check
      _
    $region15: #{tpu_custom_call.1} parent=1 // pred_check_branch
      %30 = sbr.rel (0) target = $region17
    $region16: #{tpu_custom_call.1} parent=1 // pred_region
      %s32 = ssub.s32 512, 512
      %33 = vsyncadd [#allocation7], %s32
      %s34 = sshll.u32 [#allocation6], 4
      %s35 = int_to_ptr.vmem [resolvable:$true] %s34
      %40 = dma.hbm_to_vmem [thread:$0]  %s3, 512, %s35, [#allocation7], 128, 128, 8
    $region17: #{tpu_custom_call.1} parent=1 // pred_fallthru
      _
    // Predicated region
    $region18: #{tpu_custom_call.1} parent=1 // pred_check
      _
    $region19: #{tpu_custom_call.1} parent=1 // pred_check_branch
      %42 = sbr.rel (0) target = $region21
    $region20: #{tpu_custom_call.1} parent=1 // pred_region
      _
    $region21: #{tpu_custom_call.1} parent=1 // pred_fallthru
      _
    // Predicated region
    $region22: #{tpu_custom_call.1} parent=1 // pred_check
      _
    $region23: #{tpu_custom_call.1} parent=1 // pred_check_branch
      %44 = sbr.rel (0) target = $region25
    $region24: #{tpu_custom_call.1} parent=1 // pred_region
      %45 = dma.done [#allocation4], 128
    $region25: #{tpu_custom_call.1} parent=1 // pred_fallthru
      _
    // Predicated region
    $region26: #{tpu_custom_call.1} parent=1 // pred_check
      _
    $region27: #{tpu_custom_call.1} parent=1 // pred_check_branch
      %47 = sbr.rel (0) target = $region29
    $region28: #{tpu_custom_call.1} parent=1 // pred_region
      %48 = dma.done [#allocation7], 512
    $region29: #{tpu_custom_call.1} parent=1 // pred_fallthru
      _
    %v50 = vld [vmem:[%s0] sm:$0xff]
    %v51 = vld [vmem:[%s0 + $0x8] sm:$0xff]
    %v52 = vld [vmem:[%s0 + $0x10] sm:$0xff]
    %v53 = vld [vmem:[%s0 + $0x18] sm:$0xff]
    %v54 = vld [vmem:[%s0 + $0x20] sm:$0xff]
    %v55 = vld [vmem:[%s0 + $0x28] sm:$0xff]
    %v56 = vld [vmem:[%s0 + $0x30] sm:$0xff]
    %v57 = vld [vmem:[%s0 + $0x38] sm:$0xff]
    %v58 = vld [vmem:[%s2] sm:$0xff]
    %v59 = vld [vmem:[%s2 + $0x8] sm:$0xff]
    %v60 = vld [vmem:[%s2 + $0x10] sm:$0xff]
    %v61 = vld [vmem:[%s2 + $0x18] sm:$0xff]
    %v62 = vld [vmem:[%s2 + $0x20] sm:$0xff]
    %v63 = vld [vmem:[%s2 + $0x28] sm:$0xff]
    %v64 = vld [vmem:[%s2 + $0x30] sm:$0xff]
    %v65 = vld [vmem:[%s2 + $0x38] sm:$0xff]
    %67 = vset.pattern.permute.xlu0 0
    %68 = vperm.xlu0 %67, %v58
    %v69 = vpop.permute.xlu0 %68
    %72 = vset.pattern.permute.xlu0 0
    %73 = vperm.xlu0 %72, %v59
    %v74 = vpop.permute.xlu0 %73
    %77 = vset.pattern.permute.xlu0 0
    %78 = vperm.xlu0 %77, %v60
    %v79 = vpop.permute.xlu0 %78
    %82 = vset.pattern.permute.xlu0 0
    %83 = vperm.xlu0 %82, %v61
    %v84 = vpop.permute.xlu0 %83
    %87 = vset.pattern.permute.xlu0 0
    %88 = vperm.xlu0 %87, %v62
    %v89 = vpop.permute.xlu0 %88
    %92 = vset.pattern.permute.xlu0 0
    %93 = vperm.xlu0 %92, %v63
    %v94 = vpop.permute.xlu0 %93
    %97 = vset.pattern.permute.xlu0 0
    %98 = vperm.xlu0 %97, %v64
    %v99 = vpop.permute.xlu0 %98
    %102 = vset.pattern.permute.xlu0 0
    %103 = vperm.xlu0 %102, %v65
    %v104 = vpop.permute.xlu0 %103
    %v106 = vmul.f32 %v50, %v69
    %v107 = vmul.f32 %v51, %v74
    %v108 = vmul.f32 %v52, %v79
    %v109 = vmul.f32 %v53, %v84
    %v110 = vmul.f32 %v54, %v89
    %v111 = vmul.f32 %v55, %v94
    %v112 = vmul.f32 %v56, %v99
    %v113 = vmul.f32 %v57, %v104
    %vm114 = vcmask 261120
    %v115 = vsel %vm114, %v106, 0.0
    %116 = vadd.xlane.f32.xlu0 %v115
    %v117 = vpop.xlane.xlu0 %116
    %v118 = vsel %vm114, %v107, 0.0
    %119 = vadd.xlane.f32.xlu0 %v118
    %v120 = vpop.xlane.xlu0 %119
    %v121 = vsel %vm114, %v108, 0.0
    %122 = vadd.xlane.f32.xlu0 %v121
    %v123 = vpop.xlane.xlu0 %122
    %v124 = vsel %vm114, %v109, 0.0
    %125 = vadd.xlane.f32.xlu0 %v124
    %v126 = vpop.xlane.xlu0 %125
    %v127 = vsel %vm114, %v110, 0.0
    %128 = vadd.xlane.f32.xlu0 %v127
    %v129 = vpop.xlane.xlu0 %128
    %v130 = vsel %vm114, %v111, 0.0
    %131 = vadd.xlane.f32.xlu0 %v130
    %v132 = vpop.xlane.xlu0 %131
    %v133 = vsel %vm114, %v112, 0.0
    %134 = vadd.xlane.f32.xlu0 %v133
    %v135 = vpop.xlane.xlu0 %134
    %v136 = vsel %vm114, %v113, 0.0
    %137 = vadd.xlane.f32.xlu0 %v136
    %v138 = vpop.xlane.xlu0 %137
    %v139 = vrcp.pop 32.0
    %v140 = vmul.f32 %v117, %v139
    %v141 = vmul.f32 %v120, %v139
    %v142 = vmul.f32 %v123, %v139
    %v143 = vmul.f32 %v126, %v139
    %v144 = vmul.f32 %v129, %v139
    %v145 = vmul.f32 %v132, %v139
    %v146 = vmul.f32 %v135, %v139
    %v147 = vmul.f32 %v138, %v139
    %v148 = vsub.f32 %v106, %v140
    %v149 = vsub.f32 %v107, %v141
    %v150 = vsub.f32 %v108, %v142
    %v151 = vsub.f32 %v109, %v143
    %v152 = vsub.f32 %v110, %v144
    %v153 = vsub.f32 %v111, %v145
    %v154 = vsub.f32 %v112, %v146
    %v155 = vsub.f32 %v113, %v147
    %v156 = vmul.f32 %v148, %v148
    %v157 = vmul.f32 %v149, %v149
    %v158 = vmul.f32 %v150, %v150
    %v159 = vmul.f32 %v151, %v151
    %v160 = vmul.f32 %v152, %v152
    %v161 = vmul.f32 %v153, %v153
    %v162 = vmul.f32 %v154, %v154
    %v163 = vmul.f32 %v155, %v155
    %v164 = vsel %vm114, %v156, 0.0
    %165 = vadd.xlane.f32.xlu0 %v164
    %v166 = vpop.xlane.xlu0 %165
    %v167 = vsel %vm114, %v157, 0.0
    %168 = vadd.xlane.f32.xlu0 %v167
    %v169 = vpop.xlane.xlu0 %168
    %v170 = vsel %vm114, %v158, 0.0
    %171 = vadd.xlane.f32.xlu0 %v170
    %v172 = vpop.xlane.xlu0 %171
    %v173 = vsel %vm114, %v159, 0.0
    %174 = vadd.xlane.f32.xlu0 %v173
    %v175 = vpop.xlane.xlu0 %174
    %v176 = vsel %vm114, %v160, 0.0
    %177 = vadd.xlane.f32.xlu0 %v176
    %v178 = vpop.xlane.xlu0 %177
    %v179 = vsel %vm114, %v161, 0.0
    %180 = vadd.xlane.f32.xlu0 %v179
    %v181 = vpop.xlane.xlu0 %180
    %v182 = vsel %vm114, %v162, 0.0
    %183 = vadd.xlane.f32.xlu0 %v182
    %v184 = vpop.xlane.xlu0 %183
    %v185 = vsel %vm114, %v163, 0.0
    %186 = vadd.xlane.f32.xlu0 %v185
    %v187 = vpop.xlane.xlu0 %186
    %v188 = vmul.f32 %v166, %v139
    %v189 = vmul.f32 %v169, %v139
    %v190 = vmul.f32 %v172, %v139
    %v191 = vmul.f32 %v175, %v139
    %v192 = vmul.f32 %v178, %v139
    %v193 = vmul.f32 %v181, %v139
    %v194 = vmul.f32 %v184, %v139
    %v195 = vmul.f32 %v187, %v139
    %v196 = vld [vmem:[%s4] sm:$0x1]
    %v197 = vld [vmem:[%s4 + $0x1] sm:$0x1]
    %v198 = vadd.f32 %v188, 1e-05
    %v199 = vadd.f32 %v189, 1e-05
    %v200 = vadd.f32 %v190, 1e-05
    %v201 = vadd.f32 %v191, 1e-05
    %v202 = vadd.f32 %v192, 1e-05
    %v203 = vadd.f32 %v193, 1e-05
    %v204 = vadd.f32 %v194, 1e-05
    %v205 = vadd.f32 %v195, 1e-05
    %v206 = vrsqrt.pop %v198
    %v207 = vrsqrt.pop %v199
    %v208 = vrsqrt.pop %v200
    %v209 = vrsqrt.pop %v201
    %v210 = vrsqrt.pop %v202
    %v211 = vrsqrt.pop %v203
    %v212 = vrsqrt.pop %v204
    %v213 = vrsqrt.pop %v205
    %v214 = vmul.f32 %v148, %v206
    %v215 = vmul.f32 %v149, %v207
    %v216 = vmul.f32 %v150, %v208
    %v217 = vmul.f32 %v151, %v209
    %v218 = vmul.f32 %v152, %v210
    %v219 = vmul.f32 %v153, %v211
    %v220 = vmul.f32 %v154, %v212
    %v221 = vmul.f32 %v155, %v213
    %v222 = vlaneseq
    %v223 = vshrl.u32 %v222, 7
    %v224 = vsub.s32 0, %v223
    %v225 = vrot.slane %v196, %v224
    %v226 = vmul.f32 %v214, %v225
    %v227 = vmul.f32 %v215, %v225
    %v228 = vmul.f32 %v216, %v225
    %v229 = vmul.f32 %v217, %v225
    %v230 = vmul.f32 %v218, %v225
    %v231 = vmul.f32 %v219, %v225
    %v232 = vmul.f32 %v220, %v225
    %v233 = vmul.f32 %v221, %v225
    %v234 = vlaneseq
    %v235 = vshrl.u32 %v234, 7
    %v236 = vsub.s32 0, %v235
    %v237 = vrot.slane %v197, %v236
    %v238 = vadd.f32 %v226, %v237
    %v239 = vadd.f32 %v227, %v237
    %v240 = vadd.f32 %v228, %v237
    %v241 = vadd.f32 %v229, %v237
    %v242 = vadd.f32 %v230, %v237
    %v243 = vadd.f32 %v231, %v237
    %v244 = vadd.f32 %v232, %v237
    %v245 = vadd.f32 %v233, %v237
    %v246 = vpack.c.bf16 %v239, %v238
    %v247 = vpack.c.bf16 %v241, %v240
    %v248 = vpack.c.bf16 %v243, %v242
    %v249 = vpack.c.bf16 %v245, %v244
    %v254 = vunpack.c.l.b16 %v246
    %v255 = vunpack.c.h.b16 %v246
    %v256 = vunpack.c.l.b16 %v247
    %v257 = vunpack.c.h.b16 %v247
    %v258 = vunpack.c.l.b16 %v248
    %v259 = vunpack.c.h.b16 %v248
    %v260 = vunpack.c.l.b16 %v249
    %v261 = vunpack.c.h.b16 %v249
    %v262 = vpack.c.b16 %v254, %v254
    %v263 = vpack.c.b16 %v255, %v255
    %v264 = vpack.c.b16 %v256, %v256
    %v265 = vpack.c.b16 %v257, %v257
    %v266 = vpack.c.b16 %v258, %v258
    %v267 = vpack.c.b16 %v259, %v259
    %v268 = vpack.c.b16 %v260, %v260
    %v269 = vpack.c.b16 %v261, %v261
    %vm278 = vcmask 257024
    %279 = vst.msk [vmem:[#allocation2] sm:$0xf] %vm278, %v262
    %280 = vst.msk [vmem:[#allocation2 + $0x4] sm:$0xf] %vm278, %v263
    %281 = vst.msk [vmem:[#allocation2 + $0x8] sm:$0xf] %vm278, %v264
    %282 = vst.msk [vmem:[#allocation2 + $0xc] sm:$0xf] %vm278, %v265
    %283 = vst.msk [vmem:[#allocation2 + $0x10] sm:$0xf] %vm278, %v266
    %284 = vst.msk [vmem:[#allocation2 + $0x14] sm:$0xf] %vm278, %v267
    %285 = vst.msk [vmem:[#allocation2 + $0x18] sm:$0xf] %vm278, %v268
    %286 = vst.msk [vmem:[#allocation2 + $0x1c] sm:$0xf] %vm278, %v269
    %v287 = vld [vmem:[#allocation3] sm:$0x1]
    %v288 = vld [vmem:[#allocation3 + $0x1] sm:$0x1]
    %v289 = vld [vmem:[#allocation3 + $0x2] sm:$0x1]
    %v290 = vld [vmem:[#allocation3 + $0x3] sm:$0x1]
    %v291 = vld [vmem:[#allocation3 + $0x4] sm:$0x1]
    %v292 = vld [vmem:[#allocation3 + $0x5] sm:$0x1]
    %v293 = vld [vmem:[#allocation3 + $0x6] sm:$0x1]
    %v294 = vld [vmem:[#allocation3 + $0x7] sm:$0x1]
    %v295 = vpack.c.bf16 %v287, %v287
    %v296 = vpack.c.bf16 %v288, %v288
    %v297 = vpack.c.bf16 %v289, %v289
    %v298 = vpack.c.bf16 %v290, %v290
    %v299 = vpack.c.bf16 %v291, %v291
    %v300 = vpack.c.bf16 %v292, %v292
    %v301 = vpack.c.bf16 %v293, %v293
    %v302 = vpack.c.bf16 %v294, %v294
    %v311 = vunpack.c.l.b16 %v295
    %v312 = vunpack.c.l.b16 %v296
    %v313 = vunpack.c.l.b16 %v297
    %v314 = vunpack.c.l.b16 %v298
    %v315 = vunpack.c.l.b16 %v299
    %v316 = vunpack.c.l.b16 %v300
    %v317 = vunpack.c.l.b16 %v301
    %v318 = vunpack.c.l.b16 %v302
    %v319 = vpack.c.b16 %v311, %v311
    %v320 = vpack.c.b16 %v312, %v312
    %v321 = vpack.c.b16 %v313, %v313
    %v322 = vpack.c.b16 %v314, %v314
    %v323 = vpack.c.b16 %v315, %v315
    %v324 = vpack.c.b16 %v316, %v316
    %v325 = vpack.c.b16 %v317, %v317
    %v326 = vpack.c.b16 %v318, %v318
    %v327 = vunpack.c.l.b16 %v319
    %v328 = vunpack.c.l.b16 %v320
    %v329 = vunpack.c.l.b16 %v321
    %v330 = vunpack.c.l.b16 %v322
    %v331 = vunpack.c.l.b16 %v323
    %v332 = vunpack.c.l.b16 %v324
    %v333 = vunpack.c.l.b16 %v325
    %v334 = vunpack.c.l.b16 %v326
    %v335 = vrot.slane %v328, 7
    %vm336 = vcmask 1041409
    %v337 = vsel %vm336, %v335, %v327
    %v338 = vrot.slane %v329, 6
    %vm339 = vcmask 1042434
    %v340 = vsel %vm339, %v338, %v337
    %v341 = vrot.slane %v330, 5
    %vm342 = vcmask 1043459
    %v343 = vsel %vm342, %v341, %v340
    %v344 = vrot.slane %v331, 4
    %vm345 = vcmask 1044484
    %v346 = vsel %vm345, %v344, %v343
    %v347 = vrot.slane %v332, 3
    %vm348 = vcmask 1045509
    %v349 = vsel %vm348, %v347, %v346
    %v350 = vrot.slane %v333, 2
    %vm351 = vcmask 1046534
    %v352 = vsel %vm351, %v350, %v349
    %v353 = vrot.slane %v334, 1
    %vm354 = vcmask 1047559
    %v355 = vsel %vm354, %v353, %v352
    %v356 = vpack.c.b16 %v355, %v355
    %358 = vst.msk [vmem:[#allocation2 + $0x20] sm:$0xf] %vm278, %v356
    %v359 = vld [vmem:[#allocation6] sm:$0xf]
    %v360 = vld [vmem:[#allocation6 + $0x8] sm:$0xf]
    %v361 = vld [vmem:[#allocation6 + $0x10] sm:$0xf]
    %v362 = vld [vmem:[#allocation6 + $0x18] sm:$0xf]
    %v363 = vld [vmem:[#allocation2] sm:$0xf]
    %v364 = vld [vmem:[#allocation2 + $0x4] sm:$0xf]
    %v365 = vld [vmem:[#allocation2 + $0x8] sm:$0xf]
    %v366 = vld [vmem:[#allocation2 + $0xc] sm:$0xf]
    %v367 = vld [vmem:[#allocation2 + $0x10] sm:$0xf]
    %v368 = vld [vmem:[#allocation2 + $0x14] sm:$0xf]
    %v369 = vld [vmem:[#allocation2 + $0x18] sm:$0xf]
    %v370 = vld [vmem:[#allocation2 + $0x1c] sm:$0xf]
    %v371 = vld [vmem:[#allocation2 + $0x20] sm:$0xf]
    %v381 = vunpack.c.l.b16 %v363
    %v382 = vunpack.c.l.b16 %v364
    %v383 = vunpack.c.l.b16 %v365
    %v384 = vunpack.c.l.b16 %v366
    %v385 = vunpack.c.l.b16 %v367
    %v386 = vunpack.c.l.b16 %v368
    %v387 = vunpack.c.l.b16 %v369
    %v388 = vunpack.c.l.b16 %v370
    %v389 = vunpack.c.l.b16 %v371
    %v390 = vpack.c.b16 %v382, %v381
    %v391 = vpack.c.b16 %v384, %v383
    %v392 = vpack.c.b16 %v386, %v385
    %v393 = vpack.c.b16 %v388, %v387
    %v394 = vpack.c.b16 %v389, %v389
    %v399 = vunpack.c.l.b16 %v359
    %v400 = vunpack.c.l.b16 %v360
    %v401 = vunpack.c.l.b16 %v361
    %v402 = vunpack.c.l.b16 %v362
    %v403 = vpack.c.b16 %v400, %v399
    %v404 = vpack.c.b16 %v402, %v401
    %v408 = vsel %vm114, %v390, 0
    %v411 = vsel %vm114, %v391, 0
    %v414 = vsel %vm114, %v392, 0
    %v417 = vsel %vm114, %v393, 0
    %v420 = vsel %vm114, %v394, 0
    %422 = vmatprep.subr.bf16.mxu0 0
    %423 = vmatpush1.bf16.msra.mxu0 %v403
    %424 = vmatprep.subr.bf16.mxu0 0
    %425 = vmatpush1.bf16.msra.mxu0 %v404
    %426 = vmatprep.subr.bf16.mxu0 0
    %427 = vmatpush1.bf16.msra.mxu0 0
    %428 = vmatprep.subr.bf16.mxu0 0
    %429 = vmatpush1.bf16.msra.mxu0 0
    %430 = vmatprep.subr.bf16.mxu0 0
    %431 = vmatpush1.bf16.msra.mxu0 0
    %432 = vmatprep.subr.bf16.mxu0 0
    %433 = vmatpush1.bf16.msra.mxu0 0
    %434 = vmatprep.subr.bf16.mxu0 0
    %435 = vmatpush1.bf16.msra.mxu0 0
    %436 = vmatprep.subr.bf16.mxu0 0
    %437 = vmatpush1.bf16.msra.mxu0 0
    %438 = vmatprep.subr.bf16.mxu0 0
    %439 = vmatpush1.bf16.msra.mxu0 0
    %440 = vmatprep.subr.bf16.mxu0 0
    %441 = vmatpush1.bf16.msra.mxu0 0
    %442 = vmatprep.subr.bf16.mxu0 0
    %443 = vmatpush1.bf16.msra.mxu0 0
    %444 = vmatprep.subr.bf16.mxu0 0
    %445 = vmatpush1.bf16.msra.mxu0 0
    %446 = vmatprep.subr.bf16.mxu0 0
    %447 = vmatpush1.bf16.msra.mxu0 0
    %448 = vmatprep.subr.bf16.mxu0 0
    %449 = vmatpush1.bf16.msra.mxu0 0
    %450 = vmatprep.subr.bf16.mxu0 0
    %451 = vmatpush1.bf16.msra.mxu0 0
    %452 = vmatprep.subr.bf16.mxu0 0
    %453 = vmatpush1.bf16.msra.mxu0 0
    %454 = vmatprep.mubr.bf16.mxu0 0
    %455 = vmatmul.mubr.bf16.gmra.mrb[0].mxu0 %v408
    %v456 = vpop.f32.mrb[0].mxu0
    %v457 = vadd.f32 0.0, %v456
    %v458 = vpop.f32.mrb[0].mxu0
    %v459 = vpop.f32.mrb[0].mxu0
    %v460 = vadd.f32 0.0, %v459
    %v461 = vpop.f32.mrb[0].mxu0
    %462 = vmatprep.mubr.bf16.mxu0 0
    %463 = vmatmul.mubr.bf16.gmra.mrb[0].mxu0 %v411
    %v464 = vpop.f32.mrb[0].mxu0
    %v465 = vadd.f32 0.0, %v464
    %v466 = vpop.f32.mrb[0].mxu0
    %v467 = vpop.f32.mrb[0].mxu0
    %v468 = vadd.f32 0.0, %v467
    %v469 = vpop.f32.mrb[0].mxu0
    %470 = vmatprep.mubr.bf16.mxu0 0
    %471 = vmatmul.mubr.bf16.gmra.mrb[0].mxu0 %v414
    %v472 = vpop.f32.mrb[0].mxu0
    %v473 = vadd.f32 0.0, %v472
    %v474 = vpop.f32.mrb[0].mxu0
    %v475 = vpop.f32.mrb[0].mxu0
    %v476 = vadd.f32 0.0, %v475
    %v477 = vpop.f32.mrb[0].mxu0
    %478 = vmatprep.mubr.bf16.mxu0 0
    %479 = vmatmul.mubr.bf16.gmra.mrb[0].mxu0 %v417
    %v480 = vpop.f32.mrb[0].mxu0
    %v481 = vadd.f32 0.0, %v480
    %v482 = vpop.f32.mrb[0].mxu0
    %v483 = vpop.f32.mrb[0].mxu0
    %v484 = vadd.f32 0.0, %v483
    %v485 = vpop.f32.mrb[0].mxu0
    %486 = vmatprep.mubr.bf16.mxu0 0
    %487 = vmatmul.mubr.bf16.gmra.mrb[0].mxu0 %v420
    %v488 = vpop.f32.mrb[0].mxu0
    %v489 = vadd.f32 0.0, %v488
    %v490 = vpop.f32.mrb[0].mxu0
    %v491 = vpop.f32.mrb[0].mxu0
    %v492 = vpop.f32.mrb[0].mxu0
    %493 = vdwg.mxu0
    %v494 = vld [vmem:[%s4 + $0x2] sm:$0x1]
    %v495 = vlaneseq
    %v496 = vshrl.u32 %v495, 7
    %v497 = vsub.s32 0, %v496
    %v498 = vrot.slane %v494, %v497
    %v499 = vadd.f32 %v457, %v498
    %v500 = vadd.f32 %v460, %v498
    %v501 = vadd.f32 %v465, %v498
    %v502 = vadd.f32 %v468, %v498
    %v503 = vadd.f32 %v473, %v498
    %v504 = vadd.f32 %v476, %v498
    %v505 = vadd.f32 %v481, %v498
    %v506 = vadd.f32 %v484, %v498
    %v507 = vld [vmem:[%s4 + $0x3] sm:$0x1]
    %v508 = vlaneseq
    %v509 = vshrl.u32 %v508, 7
    %v510 = vsub.s32 0, %v509
    %v511 = vrot.slane %v507, %v510
    %513 = vrot.lane.b32.xlu0 %v511, 32
    %v514 = vpop.permute.xlu0 %513
    %v516 = vadd.f32 %v457, %v514
    %v517 = vadd.f32 %v460, %v514
    %v518 = vadd.f32 %v465, %v514
    %v519 = vadd.f32 %v468, %v514
    %v520 = vadd.f32 %v473, %v514
    %v521 = vadd.f32 %v476, %v514
    %v522 = vadd.f32 %v481, %v514
    %v523 = vadd.f32 %v484, %v514
    %v524 = vld [vmem:[%s4 + $0x4] sm:$0x1]
    %v525 = vlaneseq
    %v526 = vshrl.u32 %v525, 7
    %v527 = vsub.s32 0, %v526
    %v528 = vrot.slane %v524, %v527
    %530 = vrot.lane.b32.xlu0 %v528, 64
    %v531 = vpop.permute.xlu0 %530
    %v533 = vadd.f32 %v489, %v531
    %v535 = vcombine.high %v533, %v533
    %v537 = vunpack.c.l.s4 1966171168
    %v538 = vunpack.c.0.s8 %v537
    %v539 = vlaneseq
    %v540 = vshrl.u32 %v539, 7
    %v541 = vsub.s32 %v538, %v540
    %v542 = vrot.slane %v533, %v541
    %v544 = vunpack.c.l.s4 1966171168
    %v545 = vunpack.c.0.s8 %v544
    %v546 = vlaneseq
    %v547 = vshrl.u32 %v546, 7
    %v548 = vsub.s32 %v545, %v547
    %v549 = vrot.slane %v535, %v548
    %v550 = vcombine.high %v542, %v542
    %v551 = vcombine.high %v549, %v549
    %v553 = vunpack.c.l.s4 1966171168
    %v554 = vunpack.c.0.s8 %v553
    %v555 = vlaneseq
    %v556 = vshrl.u32 %v555, 7
    %v557 = vsub.s32 %v554, %v556
    %v558 = vrot.slane %v542, %v557
    %v560 = vunpack.c.l.s4 1966171168
    %v561 = vunpack.c.0.s8 %v560
    %v562 = vlaneseq
    %v563 = vshrl.u32 %v562, 7
    %v564 = vsub.s32 %v561, %v563
    %v565 = vrot.slane %v549, %v564
    %v567 = vunpack.c.l.s4 1966171168
    %v568 = vunpack.c.0.s8 %v567
    %v569 = vlaneseq
    %v570 = vshrl.u32 %v569, 7
    %v571 = vsub.s32 %v568, %v570
    %v572 = vrot.slane %v550, %v571
    %v574 = vunpack.c.l.s4 1966171168
    %v575 = vunpack.c.0.s8 %v574
    %v576 = vlaneseq
    %v577 = vshrl.u32 %v576, 7
    %v578 = vsub.s32 %v575, %v577
    %v579 = vrot.slane %v551, %v578
    %v580 = vcombine.high %v558, %v558
    %v581 = vcombine.high %v565, %v565
    %v582 = vcombine.high %v572, %v572
    %v583 = vcombine.high %v579, %v579
    %v584 = vld [vmem:[#allocation6] sm:$0xf]
    %v585 = vld [vmem:[#allocation6 + $0x8] sm:$0xf]
    %v586 = vld [vmem:[#allocation6 + $0x10] sm:$0xf]
    %v587 = vld [vmem:[#allocation6 + $0x18] sm:$0xf]
    %v588 = vld [vmem:[%s4 + $0x5] sm:$0x1]
    %v589 = vld [vmem:[#allocation6 + $0x4] sm:$0xf]
    %v590 = vld [vmem:[#allocation6 + $0xc] sm:$0xf]
    %v591 = vld [vmem:[#allocation6 + $0x14] sm:$0xf]
    %v592 = vld [vmem:[#allocation6 + $0x1c] sm:$0xf]
    %v593 = vld [vmem:[%s4 + $0x8] sm:$0xf]
    %v594 = vpack.c.bf16 %v593, %v593
    %vm595 = vcmp.ne.f32.partialorder %v58, 1.0
    %vm596 = vcmp.ne.f32.partialorder %v59, 1.0
    %vm597 = vcmp.ne.f32.partialorder %v60, 1.0
    %vm598 = vcmp.ne.f32.partialorder %v61, 1.0
    %vm599 = vcmp.ne.f32.partialorder %v62, 1.0
    %vm600 = vcmp.ne.f32.partialorder %v63, 1.0
    %vm601 = vcmp.ne.f32.partialorder %v64, 1.0
    %vm602 = vcmp.ne.f32.partialorder %v65, 1.0
    %v603 = vsel %vm595, -1e+30, 0.0
    %v604 = vsel %vm596, -1e+30, 0.0
    %v605 = vsel %vm597, -1e+30, 0.0
    %v606 = vsel %vm598, -1e+30, 0.0
    %v607 = vsel %vm599, -1e+30, 0.0
    %v608 = vsel %vm600, -1e+30, 0.0
    %v609 = vsel %vm601, -1e+30, 0.0
    %v610 = vsel %vm602, -1e+30, 0.0
    %v611 = vlaneseq
    %v612 = vshrl.u32 %v611, 7
    %v613 = vsub.s32 0, %v612
    %v614 = vrot.slane %v558, %v613
    %v615 = vlaneseq
    %v616 = vshrl.u32 %v615, 7
    %v617 = vsub.s32 0, %v616
    %v618 = vrot.slane %v572, %v617
    %v619 = vlaneseq
    %v620 = vshrl.u32 %v619, 7
    %v621 = vsub.s32 0, %v620
    %v622 = vrot.slane %v580, %v621
    %v623 = vlaneseq
    %v624 = vshrl.u32 %v623, 7
    %v625 = vsub.s32 0, %v624
    %v626 = vrot.slane %v582, %v625
    %v627 = vlaneseq
    %v628 = vshrl.u32 %v627, 7
    %v629 = vsub.s32 0, %v628
    %v630 = vrot.slane %v565, %v629
    %v631 = vlaneseq
    %v632 = vshrl.u32 %v631, 7
    %v633 = vsub.s32 0, %v632
    %v634 = vrot.slane %v579, %v633
    %v635 = vlaneseq
    %v636 = vshrl.u32 %v635, 7
    %v637 = vsub.s32 0, %v636
    %v638 = vrot.slane %v581, %v637
    %v639 = vlaneseq
    %v640 = vshrl.u32 %v639, 7
    %v641 = vsub.s32 0, %v640
    %v642 = vrot.slane %v583, %v641
    %643 = vrot.lane.b32.xlu0 %v614, 64
    %v644 = vpop.permute.xlu0 %643
    %645 = vrot.lane.b32.xlu0 %v618, 64
    %v646 = vpop.permute.xlu0 %645
    %647 = vrot.lane.b32.xlu0 %v622, 64
    %v648 = vpop.permute.xlu0 %647
    %649 = vrot.lane.b32.xlu0 %v626, 64
    %v650 = vpop.permute.xlu0 %649
    %651 = vrot.lane.b32.xlu0 %v630, 64
    %v652 = vpop.permute.xlu0 %651
    %653 = vrot.lane.b32.xlu0 %v634, 64
    %v654 = vpop.permute.xlu0 %653
    %655 = vrot.lane.b32.xlu0 %v638, 64
    %v656 = vpop.permute.xlu0 %655
    %657 = vrot.lane.b32.xlu0 %v642, 64
    %v658 = vpop.permute.xlu0 %657
    %v667 = vmul.f32 %v499, %v644
    %v668 = vmul.f32 %v500, %v646
    %v669 = vmul.f32 %v501, %v648
    %v670 = vmul.f32 %v502, %v650
    %v671 = vmul.f32 %v503, %v652
    %v672 = vmul.f32 %v504, %v654
    %v673 = vmul.f32 %v505, %v656
    %v674 = vmul.f32 %v506, %v658
    %v675 = vpack.c.bf16 %v668, %v667
    %v676 = vpack.c.bf16 %v670, %v669
    %v677 = vpack.c.bf16 %v672, %v671
    %v678 = vpack.c.bf16 %v674, %v673
    %v683 = vunpack.c.l.b16 %v589
    %v684 = vunpack.c.l.b16 %v590
    %v685 = vunpack.c.l.b16 %v591
    %v686 = vunpack.c.l.b16 %v592
    %v687 = vpack.c.b16 %v684, %v683
    %v688 = vpack.c.b16 %v686, %v685
    %v692 = vsel %vm114, %v675, 0
    %v695 = vsel %vm114, %v676, 0
    %v698 = vsel %vm114, %v677, 0
    %v701 = vsel %vm114, %v678, 0
    %703 = vmatprep.subr.bf16.mxu0 0
    %704 = vmatpush1.bf16.msra.mxu0 %v687
    %705 = vmatprep.subr.bf16.mxu0 0
    %706 = vmatpush1.bf16.msra.mxu0 %v688
    %707 = vmatprep.subr.bf16.mxu0 0
    %708 = vmatpush1.bf16.msra.mxu0 0
    %709 = vmatprep.subr.bf16.mxu0 0
    %710 = vmatpush1.bf16.msra.mxu0 0
    %711 = vmatprep.subr.bf16.mxu0 0
    %712 = vmatpush1.bf16.msra.mxu0 0
    %713 = vmatprep.subr.bf16.mxu0 0
    %714 = vmatpush1.bf16.msra.mxu0 0
    %715 = vmatprep.subr.bf16.mxu0 0
    %716 = vmatpush1.bf16.msra.mxu0 0
    %717 = vmatprep.subr.bf16.mxu0 0
    %718 = vmatpush1.bf16.msra.mxu0 0
    %719 = vmatprep.subr.bf16.mxu0 0
    %720 = vmatpush1.bf16.msra.mxu0 0
    %721 = vmatprep.subr.bf16.mxu0 0
    %722 = vmatpush1.bf16.msra.mxu0 0
    %723 = vmatprep.subr.bf16.mxu0 0
    %724 = vmatpush1.bf16.msra.mxu0 0
    %725 = vmatprep.subr.bf16.mxu0 0
    %726 = vmatpush1.bf16.msra.mxu0 0
    %727 = vmatprep.subr.bf16.mxu0 0
    %728 = vmatpush1.bf16.msra.mxu0 0
    %729 = vmatprep.subr.bf16.mxu0 0
    %730 = vmatpush1.bf16.msra.mxu0 0
    %731 = vmatprep.subr.bf16.mxu0 0
    %732 = vmatpush1.bf16.msra.mxu0 0
    %733 = vmatprep.subr.bf16.mxu0 0
    %734 = vmatpush1.bf16.msra.mxu0 0
    %735 = vmatprep.mubr.bf16.mxu0 0
    %736 = vmatmul.mubr.bf16.gmra.mrb[0].mxu0 %v692
    %v737 = vpop.f32.mrb[0].mxu0
    %v738 = vadd.f32 0.0, %v737
    %v739 = vpop.f32.mrb[0].mxu0
    %v740 = vpop.f32.mrb[0].mxu0
    %v741 = vadd.f32 0.0, %v740
    %v742 = vpop.f32.mrb[0].mxu0
    %743 = vmatprep.mubr.bf16.mxu0 0
    %744 = vmatmul.mubr.bf16.gmra.mrb[0].mxu0 %v695
    %v745 = vpop.f32.mrb[0].mxu0
    %v746 = vadd.f32 0.0, %v745
    %v747 = vpop.f32.mrb[0].mxu0
    %v748 = vpop.f32.mrb[0].mxu0
    %v749 = vadd.f32 0.0, %v748
    %v750 = vpop.f32.mrb[0].mxu0
    %751 = vmatprep.mubr.bf16.mxu0 0
    %752 = vmatmul.mubr.bf16.gmra.mrb[0].mxu0 %v698
    %v753 = vpop.f32.mrb[0].mxu0
    %v754 = vadd.f32 0.0, %v753
    %v755 = vpop.f32.mrb[0].mxu0
    %v756 = vpop.f32.mrb[0].mxu0
    %v757 = vadd.f32 0.0, %v756
    %v758 = vpop.f32.mrb[0].mxu0
    %759 = vmatprep.mubr.bf16.mxu0 0
    %760 = vmatmul.mubr.bf16.gmra.mrb[0].mxu0 %v701
    %v761 = vpop.f32.mrb[0].mxu0
    %v762 = vadd.f32 0.0, %v761
    %v763 = vpop.f32.mrb[0].mxu0
    %v764 = vpop.f32.mrb[0].mxu0
    %v765 = vadd.f32 0.0, %v764
    %v766 = vpop.f32.mrb[0].mxu0
    %767 = vdwg.mxu0
    %v768 = vmul.f32 %v738, 0.35355338
    %v769 = vmul.f32 %v741, 0.35355338
    %v770 = vmul.f32 %v746, 0.35355338
    %v771 = vmul.f32 %v749, 0.35355338
    %v772 = vmul.f32 %v754, 0.35355338
    %v773 = vmul.f32 %v757, 0.35355338
    %v774 = vmul.f32 %v762, 0.35355338
    %v775 = vmul.f32 %v765, 0.35355338
    %777 = vset.pattern.permute.xlu0 0
    %778 = vperm.xlu0 %777, %v603
    %v779 = vpop.permute.xlu0 %778
    %782 = vset.pattern.permute.xlu0 0
    %783 = vperm.xlu0 %782, %v604
    %v784 = vpop.permute.xlu0 %783
    %787 = vset.pattern.permute.xlu0 0
    %788 = vperm.xlu0 %787, %v605
    %v789 = vpop.permute.xlu0 %788
    %792 = vset.pattern.permute.xlu0 0
    %793 = vperm.xlu0 %792, %v606
    %v794 = vpop.permute.xlu0 %793
    %797 = vset.pattern.permute.xlu0 0
    %798 = vperm.xlu0 %797, %v607
    %v799 = vpop.permute.xlu0 %798
    %802 = vset.pattern.permute.xlu0 0
    %803 = vperm.xlu0 %802, %v608
    %v804 = vpop.permute.xlu0 %803
    %807 = vset.pattern.permute.xlu0 0
    %808 = vperm.xlu0 %807, %v609
    %v809 = vpop.permute.xlu0 %808
    %812 = vset.pattern.permute.xlu0 0
    %813 = vperm.xlu0 %812, %v610
    %v814 = vpop.permute.xlu0 %813
    %v816 = vadd.f32 %v768, %v779
    %v817 = vadd.f32 %v769, %v784
    %v818 = vadd.f32 %v770, %v789
    %v819 = vadd.f32 %v771, %v794
    %v820 = vadd.f32 %v772, %v799
    %v821 = vadd.f32 %v773, %v804
    %v822 = vadd.f32 %v774, %v809
    %v823 = vadd.f32 %v775, %v814
    %vm824 = vcmask 31744
    %v825 = vsel %vm824, %v816, -inf
    %v826 = vrot.slane %v825, 4
    %v827 = vmax.f32 %v825, %v826
    %v828 = vrot.slane %v827, 2
    %v829 = vmax.f32 %v827, %v828
    %v830 = vrot.slane %v829, 1
    %v831 = vmax.f32 %v829, %v830
    %v832 = vsel %vm824, %v817, -inf
    %v833 = vrot.slane %v832, 4
    %v834 = vmax.f32 %v832, %v833
    %v835 = vrot.slane %v834, 2
    %v836 = vmax.f32 %v834, %v835
    %v837 = vrot.slane %v836, 1
    %v838 = vmax.f32 %v836, %v837
    %v839 = vsel %vm824, %v818, -inf
    %v840 = vrot.slane %v839, 4
    %v841 = vmax.f32 %v839, %v840
    %v842 = vrot.slane %v841, 2
    %v843 = vmax.f32 %v841, %v842
    %v844 = vrot.slane %v843, 1
    %v845 = vmax.f32 %v843, %v844
    %v846 = vsel %vm824, %v819, -inf
    %v847 = vrot.slane %v846, 4
    %v848 = vmax.f32 %v846, %v847
    %v849 = vrot.slane %v848, 2
    %v850 = vmax.f32 %v848, %v849
    %v851 = vrot.slane %v850, 1
    %v852 = vmax.f32 %v850, %v851
    %v853 = vsel %vm824, %v820, -inf
    %v854 = vrot.slane %v853, 4
    %v855 = vmax.f32 %v853, %v854
    %v856 = vrot.slane %v855, 2
    %v857 = vmax.f32 %v855, %v856
    %v858 = vrot.slane %v857, 1
    %v859 = vmax.f32 %v857, %v858
    %v860 = vsel %vm824, %v821, -inf
    %v861 = vrot.slane %v860, 4
    %v862 = vmax.f32 %v860, %v861
    %v863 = vrot.slane %v862, 2
    %v864 = vmax.f32 %v862, %v863
    %v865 = vrot.slane %v864, 1
    %v866 = vmax.f32 %v864, %v865
    %v867 = vsel %vm824, %v822, -inf
    %v868 = vrot.slane %v867, 4
    %v869 = vmax.f32 %v867, %v868
    %v870 = vrot.slane %v869, 2
    %v871 = vmax.f32 %v869, %v870
    %v872 = vrot.slane %v871, 1
    %v873 = vmax.f32 %v871, %v872
    %v874 = vsel %vm824, %v823, -inf
    %v875 = vrot.slane %v874, 4
    %v876 = vmax.f32 %v874, %v875
    %v877 = vrot.slane %v876, 2
    %v878 = vmax.f32 %v876, %v877
    %v879 = vrot.slane %v878, 1
    %v880 = vmax.f32 %v878, %v879
    %v881 = vsub.f32 %v816, %v831
    %v882 = vsub.f32 %v817, %v838
    %v883 = vsub.f32 %v818, %v845
    %v884 = vsub.f32 %v819, %v852
    %v885 = vsub.f32 %v820, %v859
    %v886 = vsub.f32 %v821, %v866
    %v887 = vsub.f32 %v822, %v873
    %v888 = vsub.f32 %v823, %v880
    %v889 = vmul.f32 %v881, 1.442695
    %v890 = vpow.pop %v889
    %v891 = vmul.f32 %v882, 1.442695
    %v892 = vpow.pop %v891
    %v893 = vmul.f32 %v883, 1.442695
    %v894 = vpow.pop %v893
    %v895 = vmul.f32 %v884, 1.442695
    %v896 = vpow.pop %v895
    %v897 = vmul.f32 %v885, 1.442695
    %v898 = vpow.pop %v897
    %v899 = vmul.f32 %v886, 1.442695
    %v900 = vpow.pop %v899
    %v901 = vmul.f32 %v887, 1.442695
    %v902 = vpow.pop %v901
    %v903 = vmul.f32 %v888, 1.442695
    %v904 = vpow.pop %v903
    %v905 = vsel %vm824, %v890, 0.0
    %v906 = vrot.slane %v905, 4
    %v907 = vadd.f32 %v905, %v906
    %v908 = vrot.slane %v907, 2
    %v909 = vadd.f32 %v907, %v908
    %v910 = vrot.slane %v909, 1
    %v911 = vadd.f32 %v909, %v910
    %v912 = vsel %vm824, %v892, 0.0
    %v913 = vrot.slane %v912, 4
    %v914 = vadd.f32 %v912, %v913
    %v915 = vrot.slane %v914, 2
    %v916 = vadd.f32 %v914, %v915
    %v917 = vrot.slane %v916, 1
    %v918 = vadd.f32 %v916, %v917
    %v919 = vsel %vm824, %v894, 0.0
    %v920 = vrot.slane %v919, 4
    %v921 = vadd.f32 %v919, %v920
    %v922 = vrot.slane %v921, 2
    %v923 = vadd.f32 %v921, %v922
    %v924 = vrot.slane %v923, 1
    %v925 = vadd.f32 %v923, %v924
    %v926 = vsel %vm824, %v896, 0.0
    %v927 = vrot.slane %v926, 4
    %v928 = vadd.f32 %v926, %v927
    %v929 = vrot.slane %v928, 2
    %v930 = vadd.f32 %v928, %v929
    %v931 = vrot.slane %v930, 1
    %v932 = vadd.f32 %v930, %v931
    %v933 = vsel %vm824, %v898, 0.0
    %v934 = vrot.slane %v933, 4
    %v935 = vadd.f32 %v933, %v934
    %v936 = vrot.slane %v935, 2
    %v937 = vadd.f32 %v935, %v936
    %v938 = vrot.slane %v937, 1
    %v939 = vadd.f32 %v937, %v938
    %v940 = vsel %vm824, %v900, 0.0
    %v941 = vrot.slane %v940, 4
    %v942 = vadd.f32 %v940, %v941
    %v943 = vrot.slane %v942, 2
    %v944 = vadd.f32 %v942, %v943
    %v945 = vrot.slane %v944, 1
    %v946 = vadd.f32 %v944, %v945
    %v947 = vsel %vm824, %v902, 0.0
    %v948 = vrot.slane %v947, 4
    %v949 = vadd.f32 %v947, %v948
    %v950 = vrot.slane %v949, 2
    %v951 = vadd.f32 %v949, %v950
    %v952 = vrot.slane %v951, 1
    %v953 = vadd.f32 %v951, %v952
    %v954 = vsel %vm824, %v904, 0.0
    %v955 = vrot.slane %v954, 4
    %v956 = vadd.f32 %v954, %v955
    %v957 = vrot.slane %v956, 2
    %v958 = vadd.f32 %v956, %v957
    %v959 = vrot.slane %v958, 1
    %v960 = vadd.f32 %v958, %v959
    %v961 = vrcp.pop %v911
    %v962 = vrcp.pop %v918
    %v963 = vrcp.pop %v925
    %v964 = vrcp.pop %v932
    %v965 = vrcp.pop %v939
    %v966 = vrcp.pop %v946
    %v967 = vrcp.pop %v953
    %v968 = vrcp.pop %v960
    %v969 = vmul.f32 %v890, %v961
    %v970 = vmul.f32 %v892, %v962
    %v971 = vmul.f32 %v894, %v963
    %v972 = vmul.f32 %v896, %v964
    %v973 = vmul.f32 %v898, %v965
    %v974 = vmul.f32 %v900, %v966
    %v975 = vmul.f32 %v902, %v967
    %v976 = vmul.f32 %v904, %v968
    %v977 = vpack.c.bf16 %v970, %v969
    %v978 = vpack.c.bf16 %v972, %v971
    %v979 = vpack.c.bf16 %v974, %v973
    %v980 = vpack.c.bf16 %v976, %v975
    %v982 = vsel %vm824, %v977, 0
    %v985 = vsel %vm824, %v978, 0
    %v988 = vsel %vm824, %v979, 0
    %v991 = vsel %vm824, %v980, 0
    %vm993 = vcmask 1041408
    %v995 = vsel %vm993, %v594, 0
    %997 = vmatprep.subr.bf16.mxu0 0
    %998 = vmatpush1.bf16.msra.mxu0 %v995
    %999 = vmatprep.subr.bf16.mxu0 0
    %1000 = vmatpush1.bf16.msra.mxu0 0
    %1001 = vmatprep.subr.bf16.mxu0 0
    %1002 = vmatpush1.bf16.msra.mxu0 0
    %1003 = vmatprep.subr.bf16.mxu0 0
    %1004 = vmatpush1.bf16.msra.mxu0 0
    %1005 = vmatprep.subr.bf16.mxu0 0
    %1006 = vmatpush1.bf16.msra.mxu0 0
    %1007 = vmatprep.subr.bf16.mxu0 0
    %1008 = vmatpush1.bf16.msra.mxu0 0
    %1009 = vmatprep.subr.bf16.mxu0 0
    %1010 = vmatpush1.bf16.msra.mxu0 0
    %1011 = vmatprep.subr.bf16.mxu0 0
    %1012 = vmatpush1.bf16.msra.mxu0 0
    %1013 = vmatprep.subr.bf16.mxu0 0
    %1014 = vmatpush1.bf16.msra.mxu0 0
    %1015 = vmatprep.subr.bf16.mxu0 0
    %1016 = vmatpush1.bf16.msra.mxu0 0
    %1017 = vmatprep.subr.bf16.mxu0 0
    %1018 = vmatpush1.bf16.msra.mxu0 0
    %1019 = vmatprep.subr.bf16.mxu0 0
    %1020 = vmatpush1.bf16.msra.mxu0 0
    %1021 = vmatprep.subr.bf16.mxu0 0
    %1022 = vmatpush1.bf16.msra.mxu0 0
    %1023 = vmatprep.subr.bf16.mxu0 0
    %1024 = vmatpush1.bf16.msra.mxu0 0
    %1025 = vmatprep.subr.bf16.mxu0 0
    %1026 = vmatpush1.bf16.msra.mxu0 0
    %1027 = vmatprep.subr.bf16.mxu0 0
    %1028 = vmatpush1.bf16.msra.mxu0 0
    %1029 = vmatprep.mubr.bf16.mxu0 0
    %1030 = vmatmul.mubr.bf16.gmra.mrb[0].mxu0 %v982
    %v1031 = vpop.f32.mrb[0].mxu0
    %v1032 = vadd.f32 0.0, %v1031
    %v1033 = vpop.f32.mrb[0].mxu0
    %v1034 = vpop.f32.mrb[0].mxu0
    %v1035 = vadd.f32 0.0, %v1034
    %v1036 = vpop.f32.mrb[0].mxu0
    %1037 = vmatprep.mubr.bf16.mxu0 0
    %1038 = vmatmul.mubr.bf16.gmra.mrb[0].mxu0 %v985
    %v1039 = vpop.f32.mrb[0].mxu0
    %v1040 = vadd.f32 0.0, %v1039
    %v1041 = vpop.f32.mrb[0].mxu0
    %v1042 = vpop.f32.mrb[0].mxu0
    %v1043 = vadd.f32 0.0, %v1042
    %v1044 = vpop.f32.mrb[0].mxu0
    %1045 = vmatprep.mubr.bf16.mxu0 0
    %1046 = vmatmul.mubr.bf16.gmra.mrb[0].mxu0 %v988
    %v1047 = vpop.f32.mrb[0].mxu0
    %v1048 = vadd.f32 0.0, %v1047
    %v1049 = vpop.f32.mrb[0].mxu0
    %v1050 = vpop.f32.mrb[0].mxu0
    %v1051 = vadd.f32 0.0, %v1050
    %v1052 = vpop.f32.mrb[0].mxu0
    %1053 = vmatprep.mubr.bf16.mxu0 0
    %1054 = vmatmul.mubr.bf16.gmra.mrb[0].mxu0 %v991
    %v1055 = vpop.f32.mrb[0].mxu0
    %v1056 = vadd.f32 0.0, %v1055
    %v1057 = vpop.f32.mrb[0].mxu0
    %v1058 = vpop.f32.mrb[0].mxu0
    %v1059 = vadd.f32 0.0, %v1058
    %v1060 = vpop.f32.mrb[0].mxu0
    %1061 = vdwg.mxu0
    %1070 = vrot.lane.b32.xlu0 %v516, 96
    %v1071 = vpop.permute.xlu0 %1070
    %1072 = vrot.lane.b32.xlu0 %v517, 96
    %v1073 = vpop.permute.xlu0 %1072
    %1074 = vrot.lane.b32.xlu0 %v518, 96
    %v1075 = vpop.permute.xlu0 %1074
    %1076 = vrot.lane.b32.xlu0 %v519, 96
    %v1077 = vpop.permute.xlu0 %1076
    %1078 = vrot.lane.b32.xlu0 %v520, 96
    %v1079 = vpop.permute.xlu0 %1078
    %1080 = vrot.lane.b32.xlu0 %v521, 96
    %v1081 = vpop.permute.xlu0 %1080
    %1082 = vrot.lane.b32.xlu0 %v522, 96
    %v1083 = vpop.permute.xlu0 %1082
    %1084 = vrot.lane.b32.xlu0 %v523, 96
    %v1085 = vpop.permute.xlu0 %1084
    %v1094 = vmul.f32 %v1032, %v1071
    %v1095 = vmul.f32 %v1035, %v1073
    %v1096 = vmul.f32 %v1040, %v1075
    %v1097 = vmul.f32 %v1043, %v1077
    %v1098 = vmul.f32 %v1048, %v1079
    %v1099 = vmul.f32 %v1051, %v1081
    %v1100 = vmul.f32 %v1056, %v1083
    %v1101 = vmul.f32 %v1059, %v1085
    %v1102 = vsel %vm114, %v1094, 0.0
    %v1103 = vrot.slane %v1102, 4
    %v1104 = vadd.f32 %v1102, %v1103
    %v1105 = vrot.slane %v1104, 2
    %v1106 = vadd.f32 %v1104, %v1105
    %v1107 = vrot.slane %v1106, 1
    %v1108 = vadd.f32 %v1106, %v1107
    %v1109 = vsel %vm114, %v1095, 0.0
    %v1110 = vrot.slane %v1109, 4
    %v1111 = vadd.f32 %v1109, %v1110
    %v1112 = vrot.slane %v1111, 2
    %v1113 = vadd.f32 %v1111, %v1112
    %v1114 = vrot.slane %v1113, 1
    %v1115 = vadd.f32 %v1113, %v1114
    %v1116 = vsel %vm114, %v1096, 0.0
    %v1117 = vrot.slane %v1116, 4
    %v1118 = vadd.f32 %v1116, %v1117
    %v1119 = vrot.slane %v1118, 2
    %v1120 = vadd.f32 %v1118, %v1119
    %v1121 = vrot.slane %v1120, 1
    %v1122 = vadd.f32 %v1120, %v1121
    %v1123 = vsel %vm114, %v1097, 0.0
    %v1124 = vrot.slane %v1123, 4
    %v1125 = vadd.f32 %v1123, %v1124
    %v1126 = vrot.slane %v1125, 2
    %v1127 = vadd.f32 %v1125, %v1126
    %v1128 = vrot.slane %v1127, 1
    %v1129 = vadd.f32 %v1127, %v1128
    %v1130 = vsel %vm114, %v1098, 0.0
    %v1131 = vrot.slane %v1130, 4
    %v1132 = vadd.f32 %v1130, %v1131
    %v1133 = vrot.slane %v1132, 2
    %v1134 = vadd.f32 %v1132, %v1133
    %v1135 = vrot.slane %v1134, 1
    %v1136 = vadd.f32 %v1134, %v1135
    %v1137 = vsel %vm114, %v1099, 0.0
    %v1138 = vrot.slane %v1137, 4
    %v1139 = vadd.f32 %v1137, %v1138
    %v1140 = vrot.slane %v1139, 2
    %v1141 = vadd.f32 %v1139, %v1140
    %v1142 = vrot.slane %v1141, 1
    %v1143 = vadd.f32 %v1141, %v1142
    %v1144 = vsel %vm114, %v1100, 0.0
    %v1145 = vrot.slane %v1144, 4
    %v1146 = vadd.f32 %v1144, %v1145
    %v1147 = vrot.slane %v1146, 2
    %v1148 = vadd.f32 %v1146, %v1147
    %v1149 = vrot.slane %v1148, 1
    %v1150 = vadd.f32 %v1148, %v1149
    %v1151 = vsel %vm114, %v1101, 0.0
    %v1152 = vrot.slane %v1151, 4
    %v1153 = vadd.f32 %v1151, %v1152
    %v1154 = vrot.slane %v1153, 2
    %v1155 = vadd.f32 %v1153, %v1154
    %v1156 = vrot.slane %v1155, 1
    %v1157 = vadd.f32 %v1155, %v1156
    %v1158 = vpack.c.bf16 %v1108, %v1108
    %v1159 = vpack.c.bf16 %v1115, %v1115
    %v1160 = vpack.c.bf16 %v1122, %v1122
    %v1161 = vpack.c.bf16 %v1129, %v1129
    %v1162 = vpack.c.bf16 %v1136, %v1136
    %v1163 = vpack.c.bf16 %v1143, %v1143
    %v1164 = vpack.c.bf16 %v1150, %v1150
    %v1165 = vpack.c.bf16 %v1157, %v1157
    %v1166 = vlaneseq
    %v1167 = vshrl.u32 %v1166, 7
    %v1168 = vsub.s32 0, %v1167
    %v1169 = vrot.slane %v588, %v1168
    %v1178 = vunpack.c.l.b16 %v1158
    %v1179 = vunpack.c.l.b16 %v1159
    %v1180 = vunpack.c.l.b16 %v1160
    %v1181 = vunpack.c.l.b16 %v1161
    %v1182 = vunpack.c.l.b16 %v1162
    %v1183 = vunpack.c.l.b16 %v1163
    %v1184 = vunpack.c.l.b16 %v1164
    %v1185 = vunpack.c.l.b16 %v1165
    %v1186 = vsel %vm336, %v1179, %v1178
    %v1187 = vsel %vm339, %v1180, %v1186
    %v1188 = vsel %vm342, %v1181, %v1187
    %v1189 = vsel %vm345, %v1182, %v1188
    %v1190 = vsel %vm348, %v1183, %v1189
    %v1191 = vsel %vm351, %v1184, %v1190
    %v1192 = vsel %vm354, %v1185, %v1191
    %v1193 = vpack.c.b16 %v1192, %v1192
    %v1198 = vunpack.c.l.b16 %v584
    %v1199 = vunpack.c.l.b16 %v585
    %v1200 = vunpack.c.l.b16 %v586
    %v1201 = vunpack.c.l.b16 %v587
    %v1202 = vpack.c.b16 %v1199, %v1198
    %v1203 = vpack.c.b16 %v1201, %v1200
    %1204 = vrot.lane.b32.xlu0 %v1202, 32
    %v1205 = vpop.permute.xlu0 %1204
    %1206 = vrot.lane.b32.xlu0 %v1203, 32
    %v1207 = vpop.permute.xlu0 %1206
    %v1211 = vsel %vm114, %v1193, 0
    %1213 = vmatprep.subr.bf16.mxu0 0
    %1214 = vmatpush1.bf16.msra.mxu0 %v1205
    %1215 = vmatprep.subr.bf16.mxu0 0
    %1216 = vmatpush1.bf16.msra.mxu0 %v1207
    %1217 = vmatprep.subr.bf16.mxu0 0
    %1218 = vmatpush1.bf16.msra.mxu0 0
    %1219 = vmatprep.subr.bf16.mxu0 0
    %1220 = vmatpush1.bf16.msra.mxu0 0
    %1221 = vmatprep.subr.bf16.mxu0 0
    %1222 = vmatpush1.bf16.msra.mxu0 0
    %1223 = vmatprep.subr.bf16.mxu0 0
    %1224 = vmatpush1.bf16.msra.mxu0 0
    %1225 = vmatprep.subr.bf16.mxu0 0
    %1226 = vmatpush1.bf16.msra.mxu0 0
    %1227 = vmatprep.subr.bf16.mxu0 0
    %1228 = vmatpush1.bf16.msra.mxu0 0
    %1229 = vmatprep.subr.bf16.mxu0 0
    %1230 = vmatpush1.bf16.msra.mxu0 0
    %1231 = vmatprep.subr.bf16.mxu0 0
    %1232 = vmatpush1.bf16.msra.mxu0 0
    %1233 = vmatprep.subr.bf16.mxu0 0
    %1234 = vmatpush1.bf16.msra.mxu0 0
    %1235 = vmatprep.subr.bf16.mxu0 0
    %1236 = vmatpush1.bf16.msra.mxu0 0
    %1237 = vmatprep.subr.bf16.mxu0 0
    %1238 = vmatpush1.bf16.msra.mxu0 0
    %1239 = vmatprep.subr.bf16.mxu0 0
    %1240 = vmatpush1.bf16.msra.mxu0 0
    %1241 = vmatprep.subr.bf16.mxu0 0
    %1242 = vmatpush1.bf16.msra.mxu0 0
    %1243 = vmatprep.subr.bf16.mxu0 0
    %1244 = vmatpush1.bf16.msra.mxu0 0
    %1245 = vmatprep.mubr.bf16.mxu0 0
    %1246 = vmatmul.mubr.bf16.gmra.mrb[0].mxu0 %v1211
    %v1247 = vpop.f32.mrb[0].mxu0
    %v1248 = vadd.f32 %v1169, %v1247
    %v1249 = vpop.f32.mrb[0].mxu0
    %v1250 = vpop.f32.mrb[0].mxu0
    %v1251 = vpop.f32.mrb[0].mxu0
    %1252 = vdwg.mxu0
    %1253 = vst.msk [vmem:[#allocation8] sm:$0xff] %vm114, %v1248
    // Predicated region
    $region30: #{tpu_custom_call.1} parent=1 // pred_check
      _
    $region31: #{tpu_custom_call.1} parent=1 // pred_check_branch
      %1255 = sbr.rel (0) target = $region33
    $region32: #{tpu_custom_call.1} parent=1 // pred_region
      %s1257 = ssub.s32 128, 128
      %1258 = vsyncadd [#allocation5], %s1257
      %s1260 = sshll.u32 [#allocation8], 4
      %s1261 = int_to_ptr.vmem [resolvable:$true] %s1260
      %1263 = dma.vmem_to_hbm [thread:$0]  %s1261, 128, %s5, [#allocation5]
    $region33: #{tpu_custom_call.1} parent=1 // pred_fallthru
      _
    // Predicated region
    $region34: #{tpu_custom_call.1} parent=1 // pred_check
      _
    $region35: #{tpu_custom_call.1} parent=1 // pred_check_branch
      %1265 = sbr.rel (0) target = $region37
    $region36: #{tpu_custom_call.1} parent=1 // pred_region
      %1266 = dma.done [#allocation5], 128
    $region37: #{tpu_custom_call.1} parent=1 // pred_fallthru
      _
    %1267 = vsyncpa [#allocation4], 1
    %1268 = vsyncpa [#allocation7], 1
    %1269 = vsyncpa [#allocation5], 1

</llo_original>
